<compile_context>
chip_gen: v6e
topology: v6e:2x2x1
jax: 0.10.0
libtpu: 0.0.40
codegen_flags: <defaults>
</compile_context>

<pallas_src>
import math

import jax
import jax.numpy as jnp
from jax import lax
from jax.experimental import pallas as pl
from jax.experimental.pallas import tpu as pltpu


def _round_up(x, m):
    return ((x + m - 1) // m) * m


def _make_nll_kernel(n_rows, tile_rows, num_classes):
    """Build the weighted-NLL reduction kernel for static (N, tile, C)."""
    T, C = tile_rows, num_classes
    G = T // 8  # row-groups of 8 (one sublane tile each) per grid step

    def kernel(pred_ref, tgt_ref, w_ref, out_ref, acc_num, acc_den):
        i = pl.program_id(0)

        @pl.when(i == 0)
        def _init():
            acc_num[...] = jnp.zeros_like(acc_num)
            acc_den[...] = jnp.zeros_like(acc_den)

        pred = pred_ref[...].astype(jnp.float32)  # (T, C) log-probs, upcast in vregs
        tgt = tgt_ref[...]                        # (T, 1) i32 class ids
        w = w_ref[...]                            # (1, C) f32 class weights

        # One-hot select of the target class, with a validity mask for the
        # (possibly) ragged last tile: rows with global index >= N contribute 0.
        cls = lax.broadcasted_iota(jnp.int32, (T, C), 1)    # (T, C)
        rows = lax.broadcasted_iota(jnp.int32, (T, 1), 0)   # (T, 1)
        valid = (i * T + rows) < n_rows                     # (T, 1) bool
        picked = (cls == tgt) & valid                       # (T, C) bool

        # Fused gather: weight[t] (denominator) and weight[t]*pred[t]
        # (numerator). jnp.where (select, not mask-multiply) so garbage in
        # out-of-bounds rows can never inject NaN/Inf into the sums.
        zero = jnp.float32(0.0)
        wm = jnp.where(picked, w, zero)                     # (T, C)
        contrib = jnp.where(picked, pred * w, zero)         # (T, C)

        # Vector accumulation: reduce only over the (VPU-only) leading
        # row-group axis per step; the full XLU reduction to a scalar happens
        # once, in the epilogue.
        acc_num[...] += jnp.sum(contrib.reshape(G, 8, C), axis=0)
        acc_den[...] += jnp.sum(wm.reshape(G, 8, C), axis=0)

        @pl.when(i == pl.num_programs(0) - 1)
        def _finalize():
            num = jnp.sum(acc_num[...], axis=(0, 1), keepdims=True)  # (1, 1)
            den = jnp.sum(acc_den[...], axis=(0, 1), keepdims=True)  # (1, 1)
            out_ref[...] = -(num * pl.reciprocal(den, approx=False))

    return kernel


def nll_loss_pallas(pred, target, weight, *, tile_rows=4096):
    """Weighted NLL loss (mean reduction). pred: (N, C) log-probabilities."""
    N, C = pred.shape

    # Largest useful tile: the whole problem (rounded up to the sublane
    # quantum of 8) or `tile_rows`, whichever is smaller.  Keeps the grid as
    # short as possible; per-step fixed overhead dominates this tiny-C kernel.
    t = min(int(tile_rows), _round_up(N, 8))
    t = max(8, (t // 8) * 8)
    grid = (pl.cdiv(N, t),)

    tgt2d = target.reshape(N, 1).astype(jnp.int32)
    w2d = weight.reshape(1, C).astype(jnp.float32)

    kernel = _make_nll_kernel(N, t, C)
    out = pl.pallas_call(
        kernel,
        out_shape=jax.ShapeDtypeStruct((1, 1), jnp.float32),
        grid_spec=pltpu.PrefetchScalarGridSpec(
            num_scalar_prefetch=0,
            grid=grid,
            in_specs=[
                pl.BlockSpec((t, C), lambda i: (i, 0)),   # pred tile (native dtype)
                pl.BlockSpec((t, 1), lambda i: (i, 0)),   # target tile
                pl.BlockSpec((1, C), lambda i: (0, 0)),   # class weights (resident)
            ],
            out_specs=pl.BlockSpec((1, 1), lambda i: (0, 0)),
            scratch_shapes=[
                pltpu.VMEM((8, C), jnp.float32),          # numerator partials
                pltpu.VMEM((8, C), jnp.float32),          # denominator partials
            ],
        ),
        compiler_params=pltpu.CompilerParams(
            dimension_semantics=("arbitrary",),
        ),
    )(pred, tgt2d, w2d)
    return out[0, 0]


class GetLossPallas:
    """JAX/Pallas port of get_loss (forward only), default loss_func='nll_loss'."""

    def __init__(self, num_classes, batch_size, loss_func="nll_loss"):
        self.num_classes = num_classes
        self.batchsize = batch_size
        self.loss_func = loss_func
        self.hiera_map = [0, 0, 0, 1, 1, 2, 2, 3, 3, 3, 4, 2, 4]
        self.hiera_index = [[0, 1, 2], [3, 4], [5, 6, 11], [7, 8, 9], [10, 12]]

    def __call__(self, step, pred, target, trans_feat, weight):
        factor = 0
        loss_triplet = jnp.float32(0.0)
        if self.loss_func == "nll_loss":
            total_loss = nll_loss_pallas(pred, target, weight)
            return total_loss, factor, loss_triplet
        # TODO(synk): 'hera_embedding' branches need TreeTripletLoss (not provided).
        raise NotImplementedError(self.loss_func)


if __name__ == "__main__":
    key = jax.random.PRNGKey(0)
    num_classes = 13           # matches len(hiera_map) in the module
    batch_size = 2
    npoint = 128
    N = batch_size * npoint    # 256 rows

    k1, k2, k3, k4 = jax.random.split(key, 4)
    logits = jax.random.normal(k1, (N, num_classes), dtype=jnp.float32)
    pred = jax.nn.log_softmax(logits, axis=-1)                       # log-probs
    target = jax.random.randint(k2, (N,), 0, num_classes, dtype=jnp.int32)
    weight = jax.random.uniform(k3, (num_classes,), minval=0.5, maxval=1.5,
                                dtype=jnp.float32)
    trans_feat = jax.random.normal(k4, (batch_size, 64, npoint), dtype=jnp.float32)
    step = jnp.int32(1000)

    loss_mod = GetLossPallas(num_classes, batch_size, loss_func="nll_loss")
    total_loss, factor, loss_triplet = loss_mod(step, pred, target, trans_feat, weight)
    total_loss = jax.block_until_ready(total_loss)

    # reference check (plain JAX) for the weighted-mean NLL semantics
    w_t = weight[target]
    ref = -jnp.sum(w_t * pred[jnp.arange(N), target]) / jnp.sum(w_t)
    assert jnp.allclose(total_loss, ref, rtol=1e-5, atol=1e-5), (total_loss, ref)

    # extra check: ragged N (not a multiple of the tile) with a multi-step grid
    # to exercise the cdiv + row-mask path and the cross-step accumulators.
    N2 = 250
    pred2 = pred[:N2]
    target2 = target[:N2]
    loss2 = nll_loss_pallas(pred2, target2, weight, tile_rows=64)
    loss2 = jax.block_until_ready(loss2)
    w_t2 = weight[target2]
    ref2 = -jnp.sum(w_t2 * pred2[jnp.arange(N2), target2]) / jnp.sum(w_t2)
    assert jnp.allclose(loss2, ref2, rtol=1e-5, atol=1e-5), (loss2, ref2)

    print("KERNEL_OK")
</pallas_src>

<mosaic_0001>
module attributes {stable_mosaic.version = 11 : i64} {
  func.func @kernel(%arg0: i32, %arg1: memref<256x13xf32, #tpu.memory_space<vmem>>, %arg2: memref<256x1xi32, #tpu.memory_space<vmem>>, %arg3: memref<1x13xf32, #tpu.memory_space<vmem>>, %arg4: memref<1x1xf32, #tpu.memory_space<vmem>>, %arg5: memref<8x13xf32, #tpu.memory_space<vmem>>, %arg6: memref<8x13xf32, #tpu.memory_space<vmem>>) attributes {dimension_semantics = [#tpu.dimension_semantics<arbitrary>], iteration_bounds = array<i64: 1>, scalar_prefetch = 0 : i64, scratch_operands = 2 : i64, tpu.core_type = #tpu.core_type<tc>, window_params = [{transform_indices = @transform_0, window_bounds = array<i64: 256, 13>}, {transform_indices = @transform_1, window_bounds = array<i64: 256, 1>}, {pipeline_mode = #tpu.pipeline_mode<synchronous>, transform_indices = @transform_2, window_bounds = array<i64: 1, 13>}, {pipeline_mode = #tpu.pipeline_mode<synchronous>, transform_indices = @transform_3, window_bounds = array<i64: 1, 1>}]} {
    %c0_i32 = arith.constant 0 : i32
    %0 = arith.cmpi eq, %arg0, %c0_i32 : i32
    %1 = arith.extui %0 : i1 to i32
    %c0_i32_0 = arith.constant 0 : i32
    %2 = arith.cmpi ne, %1, %c0_i32_0 : i32
    scf.if %2 {
      %cst_20 = arith.constant 0.000000e+00 : f32
      %38 = vector.broadcast %cst_20 : f32 to vector<8x13xf32>
      %c0_21 = arith.constant 0 : index
      %c0_22 = arith.constant 0 : index
      %39 = vector.load %arg5[%c0_21, %c0_22] : memref<8x13xf32, #tpu.memory_space<vmem>>, vector<8x13xf32>
      tpu.vector_store %arg5[%c0_21, %c0_22], %38 {strides = array<i32>} : memref<8x13xf32, #tpu.memory_space<vmem>>, vector<8x13xf32>,
      %cst_23 = arith.constant 0.000000e+00 : f32
      %40 = vector.broadcast %cst_23 : f32 to vector<8x13xf32>
      %c0_24 = arith.constant 0 : index
      %c0_25 = arith.constant 0 : index
      %41 = vector.load %arg6[%c0_24, %c0_25] : memref<8x13xf32, #tpu.memory_space<vmem>>, vector<8x13xf32>
      tpu.vector_store %arg6[%c0_24, %c0_25], %40 {strides = array<i32>} : memref<8x13xf32, #tpu.memory_space<vmem>>, vector<8x13xf32>,
    } else {
    }
    %c0 = arith.constant 0 : index
    %c0_1 = arith.constant 0 : index
    %3 = vector.load %arg1[%c0, %c0_1] : memref<256x13xf32, #tpu.memory_space<vmem>>, vector<256x13xf32>
    %c0_2 = arith.constant 0 : index
    %c0_3 = arith.constant 0 : index
    %4 = vector.load %arg2[%c0_2, %c0_3] : memref<256x1xi32, #tpu.memory_space<vmem>>, vector<256x1xi32>
    %c0_4 = arith.constant 0 : index
    %c0_5 = arith.constant 0 : index
    %5 = vector.load %arg3[%c0_4, %c0_5] : memref<1x13xf32, #tpu.memory_space<vmem>>, vector<1x13xf32>
    %6 = tpu.iota {dimensions = array<i32: 1>} : vector<256x13xi32>
    %7 = tpu.iota {dimensions = array<i32: 0>} : vector<256x1xi32>
    %c256_i32 = arith.constant 256 : i32
    %8 = arith.muli %arg0, %c256_i32 : i32
    %9 = vector.broadcast %8 : i32 to vector<256x1xi32>
    %10 = arith.addi %9, %7 : vector<256x1xi32>
    %c256_i32_6 = arith.constant 256 : i32
    %11 = vector.broadcast %c256_i32_6 : i32 to vector<256x1xi32>
    %12 = arith.cmpi slt, %10, %11 : vector<256x1xi32>
    %13 = vector.broadcast %4 : vector<256x1xi32> to vector<256x13xi32>
    %14 = arith.cmpi eq, %6, %13 : vector<256x13xi32>
    %15 = vector.broadcast %12 : vector<256x1xi1> to vector<256x13xi1>
    %16 = arith.andi %14, %15 : vector<256x13xi1>
    %cst = arith.constant 0.000000e+00 : f32
    %17 = vector.shape_cast %5 : vector<1x13xf32> to vector<1x13xf32>
    %18 = vector.broadcast %17 : vector<1x13xf32> to vector<256x13xf32>
    %19 = vector.broadcast %cst : f32 to vector<256x13xf32>
    %20 = arith.select %16, %18, %19 : vector<256x13xi1>, vector<256x13xf32>
    %21 = vector.broadcast %5 : vector<1x13xf32> to vector<256x13xf32>
    %22 = arith.mulf %3, %21 : vector<256x13xf32>
    %cst_7 = arith.constant 0.000000e+00 : f32
    %23 = vector.broadcast %cst_7 : f32 to vector<256x13xf32>
    %24 = arith.select %16, %22, %23 : vector<256x13xi1>, vector<256x13xf32>
    %c0_8 = arith.constant 0 : index
    %c0_9 = arith.constant 0 : index
    %25 = vector.load %arg5[%c0_8, %c0_9] : memref<8x13xf32, #tpu.memory_space<vmem>>, vector<8x13xf32>
    %26 = vector.shape_cast %24 : vector<256x13xf32> to vector<32x8x13xf32>
    %cst_10 = arith.constant dense<0.000000e+00> : vector<8x13xf32>
    %27 = vector.multi_reduction <add>, %26, %cst_10 [0] : vector<32x8x13xf32> to vector<8x13xf32>
    %28 = arith.addf %25, %27 : vector<8x13xf32>
    %c0_11 = arith.constant 0 : index
    %c0_12 = arith.constant 0 : index
    %29 = vector.load %arg5[%c0_11, %c0_12] : memref<8x13xf32, #tpu.memory_space<vmem>>, vector<8x13xf32>
    tpu.vector_store %arg5[%c0_11, %c0_12], %28 {strides = array<i32>} : memref<8x13xf32, #tpu.memory_space<vmem>>, vector<8x13xf32>,
    %c0_13 = arith.constant 0 : index
    %c0_14 = arith.constant 0 : index
    %30 = vector.load %arg6[%c0_13, %c0_14] : memref<8x13xf32, #tpu.memory_space<vmem>>, vector<8x13xf32>
    %31 = vector.shape_cast %20 : vector<256x13xf32> to vector<32x8x13xf32>
    %cst_15 = arith.constant dense<0.000000e+00> : vector<8x13xf32>
    %32 = vector.multi_reduction <add>, %31, %cst_15 [0] : vector<32x8x13xf32> to vector<8x13xf32>
    %33 = arith.addf %30, %32 : vector<8x13xf32>
    %c0_16 = arith.constant 0 : index
    %c0_17 = arith.constant 0 : index
    %34 = vector.load %arg6[%c0_16, %c0_17] : memref<8x13xf32, #tpu.memory_space<vmem>>, vector<8x13xf32>
    tpu.vector_store %arg6[%c0_16, %c0_17], %33 {strides = array<i32>} : memref<8x13xf32, #tpu.memory_space<vmem>>, vector<8x13xf32>,
    %c0_i32_18 = arith.constant 0 : i32
    %35 = arith.cmpi eq, %arg0, %c0_i32_18 : i32
    %36 = arith.extui %35 : i1 to i32
    %c0_i32_19 = arith.constant 0 : i32
    %37 = arith.cmpi ne, %36, %c0_i32_19 : i32
    scf.if %37 {
      %c0_20 = arith.constant 0 : index
      %c0_21 = arith.constant 0 : index
      %38 = vector.load %arg5[%c0_20, %c0_21] : memref<8x13xf32, #tpu.memory_space<vmem>>, vector<8x13xf32>
      %39 = vector.shape_cast %38 : vector<8x13xf32> to vector<1x8x13xf32>
      %cst_22 = arith.constant dense<0.000000e+00> : vector<1xf32>
      %40 = vector.multi_reduction <add>, %39, %cst_22 [1, 2] : vector<1x8x13xf32> to vector<1xf32>
      %41 = vector.shape_cast %40 : vector<1xf32> to vector<1x1x1xf32>
      %42 = vector.extract %41[0, 0, 0] : f32 from vector<1x1x1xf32>
      %43 = vector.broadcast %42 : f32 to vector<1x1xf32>
      %c0_23 = arith.constant 0 : index
      %c0_24 = arith.constant 0 : index
      %44 = vector.load %arg6[%c0_23, %c0_24] : memref<8x13xf32, #tpu.memory_space<vmem>>, vector<8x13xf32>
      %45 = vector.shape_cast %44 : vector<8x13xf32> to vector<1x8x13xf32>
      %cst_25 = arith.constant dense<0.000000e+00> : vector<1xf32>
      %46 = vector.multi_reduction <add>, %45, %cst_25 [1, 2] : vector<1x8x13xf32> to vector<1xf32>
      %47 = vector.shape_cast %46 : vector<1xf32> to vector<1x1x1xf32>
      %48 = vector.extract %47[0, 0, 0] : f32 from vector<1x1x1xf32>
      %49 = vector.broadcast %48 : f32 to vector<1x1xf32>
      %50 = tpu.reciprocal %49 : vector<1x1xf32> -> vector<1x1xf32>
      %51 = arith.mulf %43, %50 : vector<1x1xf32>
      %cst_26 = arith.constant 0.000000e+00 : f32
      %52 = vector.broadcast %cst_26 : f32 to vector<1x1xf32>
      %53 = arith.subf %52, %51 : vector<1x1xf32>
      %c0_27 = arith.constant 0 : index
      %c0_28 = arith.constant 0 : index
      %54 = vector.load %arg4[%c0_27, %c0_28] : memref<1x1xf32, #tpu.memory_space<vmem>>, vector<1x1xf32>
      tpu.vector_store %arg4[%c0_27, %c0_28], %53 {strides = array<i32>} : memref<1x1xf32, #tpu.memory_space<vmem>>, vector<1x1xf32>,
    } else {
    }
    return
  }
  func.func @transform_0(%arg0: i32) -> (i32, i32) {
    %c0_i32 = arith.constant 0 : i32
    %c0_i32_0 = arith.constant 0 : i32
    return %arg0, %c0_i32 : i32, i32
  }
  func.func @transform_1(%arg0: i32) -> (i32, i32) {
    %c0_i32 = arith.constant 0 : i32
    %c0_i32_0 = arith.constant 0 : i32
    return %arg0, %c0_i32 : i32, i32
  }
  func.func @transform_2(%arg0: i32) -> (i32, i32) {
    %c0_i32 = arith.constant 0 : i32
    %c0_i32_0 = arith.constant 0 : i32
    %c0_i32_1 = arith.constant 0 : i32
    return %c0_i32, %c0_i32_0 : i32, i32
  }
  func.func @transform_3(%arg0: i32) -> (i32, i32) {
    %c0_i32 = arith.constant 0 : i32
    %c0_i32_0 = arith.constant 0 : i32
    %c0_i32_1 = arith.constant 0 : i32
    return %c0_i32, %c0_i32_0 : i32, i32
  }
}

</mosaic_0001>

<llo_original>
// kernel: tpu_custom_call.1
$region0: #{tpu_custom_call.1}
  #allocation0 [shape = 'u32[]', space=smem, size = 0x4, offset = 0x4, fixed_abs, tag = 'smem constant byte address 0x4 - core index']
  #allocation1 [shape = 'u32[144,128]{1,0:T(1,128)}', space=vmem, size = 0x12000, scoped, tag = 'internal scratch']
  #allocation2 [shape = 'f32[8,13]{1,0:T(8,128)}', space=vmem, size = 0x1000, scoped, tag = 'scratch operand']
  #allocation3 [shape = 'f32[8,13]{1,0:T(8,128)}', space=vmem, size = 0x1000, scoped, tag = 'scratch operand']
  %s0 = inlined_call_operand.vmem [shape: f32[256,13], index: 0, kind: input, shape index: {}]
  %s1 = inlined_call_operand.vmem [shape: s32[256,1], index: 1, kind: input, shape index: {}]
  %s2 = inlined_call_operand.vmem [shape: f32[1,13], index: 2, kind: input, shape index: {}]
  %s3 = inlined_call_operand.hbm [shape: f32[1,1], index: 3, kind: output, shape index: {}]
  %s4 = sld [smem:[#allocation0]]
  $region30: #{tpu_custom_call.1} parent=0
    _
  %s6 = ssub.s32 1, %s4
  %s7 = scalar_select 0, %s6, %s4
  $region1: #{tpu_custom_call.1} parent=0
    #allocation4 [shape = 'u8[512]{0}', space=vmem, size = 0x400, scoped, tag = 'output window, operand 0, single buffered']
    #allocation5 [shape = 's32[1]{0}', space=sflag, size = 0x4, scoped, tag = 'scoped memory for tpu_custom_call.1']
    %8 = vsyncpa [#allocation5], 0
    // Predicated region
    $region2: #{tpu_custom_call.1} parent=1 // pred_check
      _
    $region3: #{tpu_custom_call.1} parent=1 // pred_check_branch
      %10 = sbr.rel (0) target = $region5
    $region4: #{tpu_custom_call.1} parent=1 // pred_region
      _
    $region5: #{tpu_custom_call.1} parent=1 // pred_fallthru
      _
    // Predicated region
    $region6: #{tpu_custom_call.1} parent=1 // pred_check
      _
    $region7: #{tpu_custom_call.1} parent=1 // pred_check_branch
      %12 = sbr.rel (0) target = $region9
    $region8: #{tpu_custom_call.1} parent=1 // pred_region
      _
    $region9: #{tpu_custom_call.1} parent=1 // pred_fallthru
      _
    // Predicated region
    $region10: #{tpu_custom_call.1} parent=1 // pred_check
      _
    $region11: #{tpu_custom_call.1} parent=1 // pred_check_branch
      %14 = sbr.rel (0) target = $region13
    $region12: #{tpu_custom_call.1} parent=1 // pred_region
      _
    $region13: #{tpu_custom_call.1} parent=1 // pred_fallthru
      _
    %p15 = scmp.eq.s32.totalorder 0, 0
    // Predicated region
    $region14: #{tpu_custom_call.1} parent=1 // pred_check
      %p16 = pneg %p15
    $region15: #{tpu_custom_call.1} parent=1 // pred_check_branch
      %18 = sbr.rel (%p16) target = $region17
    $region16: #{tpu_custom_call.1} parent=1 // pred_region
      %vm19 = vcmask 105472
      %20 = vst.msk [vmem:[#allocation2] sm:$0xff] %vm19, 0.0
      %21 = vst.msk [vmem:[#allocation3] sm:$0xff] %vm19, 0.0
    $region17: #{tpu_custom_call.1} parent=1 // pred_fallthru
      _
    %v22 = vld [vmem:[%s0] sm:$0xff]
    %v23 = vld [vmem:[%s0 + $0x8] sm:$0xff]
    %v24 = vld [vmem:[%s0 + $0x10] sm:$0xff]
    %v25 = vld [vmem:[%s0 + $0x18] sm:$0xff]
    %v26 = vld [vmem:[%s0 + $0x20] sm:$0xff]
    %v27 = vld [vmem:[%s0 + $0x28] sm:$0xff]
    %v28 = vld [vmem:[%s0 + $0x30] sm:$0xff]
    %v29 = vld [vmem:[%s0 + $0x38] sm:$0xff]
    %v30 = vld [vmem:[%s0 + $0x40] sm:$0xff]
    %v31 = vld [vmem:[%s0 + $0x48] sm:$0xff]
    %v32 = vld [vmem:[%s0 + $0x50] sm:$0xff]
    %v33 = vld [vmem:[%s0 + $0x58] sm:$0xff]
    %v34 = vld [vmem:[%s0 + $0x60] sm:$0xff]
    %v35 = vld [vmem:[%s0 + $0x68] sm:$0xff]
    %v36 = vld [vmem:[%s0 + $0x70] sm:$0xff]
    %v37 = vld [vmem:[%s0 + $0x78] sm:$0xff]
    %v38 = vld [vmem:[%s0 + $0x80] sm:$0xff]
    %v39 = vld [vmem:[%s0 + $0x88] sm:$0xff]
    %v40 = vld [vmem:[%s0 + $0x90] sm:$0xff]
    %v41 = vld [vmem:[%s0 + $0x98] sm:$0xff]
    %v42 = vld [vmem:[%s0 + $0xa0] sm:$0xff]
    %v43 = vld [vmem:[%s0 + $0xa8] sm:$0xff]
    %v44 = vld [vmem:[%s0 + $0xb0] sm:$0xff]
    %v45 = vld [vmem:[%s0 + $0xb8] sm:$0xff]
    %v46 = vld [vmem:[%s0 + $0xc0] sm:$0xff]
    %v47 = vld [vmem:[%s0 + $0xc8] sm:$0xff]
    %v48 = vld [vmem:[%s0 + $0xd0] sm:$0xff]
    %v49 = vld [vmem:[%s0 + $0xd8] sm:$0xff]
    %v50 = vld [vmem:[%s0 + $0xe0] sm:$0xff]
    %v51 = vld [vmem:[%s0 + $0xe8] sm:$0xff]
    %v52 = vld [vmem:[%s0 + $0xf0] sm:$0xff]
    %v53 = vld [vmem:[%s0 + $0xf8] sm:$0xff]
    %v54 = vld [vmem:[%s1] sm:$0xff]
    %v55 = vld [vmem:[%s1 + $0x8] sm:$0xff]
    %v56 = vld [vmem:[%s1 + $0x10] sm:$0xff]
    %v57 = vld [vmem:[%s1 + $0x18] sm:$0xff]
    %v58 = vld [vmem:[%s1 + $0x20] sm:$0xff]
    %v59 = vld [vmem:[%s1 + $0x28] sm:$0xff]
    %v60 = vld [vmem:[%s1 + $0x30] sm:$0xff]
    %v61 = vld [vmem:[%s1 + $0x38] sm:$0xff]
    %v62 = vld [vmem:[%s1 + $0x40] sm:$0xff]
    %v63 = vld [vmem:[%s1 + $0x48] sm:$0xff]
    %v64 = vld [vmem:[%s1 + $0x50] sm:$0xff]
    %v65 = vld [vmem:[%s1 + $0x58] sm:$0xff]
    %v66 = vld [vmem:[%s1 + $0x60] sm:$0xff]
    %v67 = vld [vmem:[%s1 + $0x68] sm:$0xff]
    %v68 = vld [vmem:[%s1 + $0x70] sm:$0xff]
    %v69 = vld [vmem:[%s1 + $0x78] sm:$0xff]
    %v70 = vld [vmem:[%s1 + $0x80] sm:$0xff]
    %v71 = vld [vmem:[%s1 + $0x88] sm:$0xff]
    %v72 = vld [vmem:[%s1 + $0x90] sm:$0xff]
    %v73 = vld [vmem:[%s1 + $0x98] sm:$0xff]
    %v74 = vld [vmem:[%s1 + $0xa0] sm:$0xff]
    %v75 = vld [vmem:[%s1 + $0xa8] sm:$0xff]
    %v76 = vld [vmem:[%s1 + $0xb0] sm:$0xff]
    %v77 = vld [vmem:[%s1 + $0xb8] sm:$0xff]
    %v78 = vld [vmem:[%s1 + $0xc0] sm:$0xff]
    %v79 = vld [vmem:[%s1 + $0xc8] sm:$0xff]
    %v80 = vld [vmem:[%s1 + $0xd0] sm:$0xff]
    %v81 = vld [vmem:[%s1 + $0xd8] sm:$0xff]
    %v82 = vld [vmem:[%s1 + $0xe0] sm:$0xff]
    %v83 = vld [vmem:[%s1 + $0xe8] sm:$0xff]
    %v84 = vld [vmem:[%s1 + $0xf0] sm:$0xff]
    %v85 = vld [vmem:[%s1 + $0xf8] sm:$0xff]
    %v86 = vld [vmem:[%s2] sm:$0x1]
    %v87 = vlaneseq
    %v88 = vand.u32 %v87, 127
    %v89 = vlaneseq
    %v90 = vshrl.u32 %v89, 7
    %v91 = vadd.s32 %v90, 8
    %v92 = vadd.s32 %v90, 16
    %v93 = vadd.s32 %v90, 24
    %v94 = vadd.s32 %v90, 32
    %v95 = vadd.s32 %v90, 40
    %v96 = vadd.s32 %v90, 48
    %v97 = vadd.s32 %v90, 56
    %v98 = vadd.s32 %v90, 64
    %v99 = vadd.s32 %v90, 72
    %v100 = vadd.s32 %v90, 80
    %v101 = vadd.s32 %v90, 88
    %v102 = vadd.s32 %v90, 96
    %v103 = vadd.s32 %v90, 104
    %v104 = vadd.s32 %v90, 112
    %v105 = vadd.s32 %v90, 120
    %v106 = vadd.s32 %v90, 128
    %v107 = vadd.s32 %v90, 136
    %v108 = vadd.s32 %v90, 144
    %v109 = vadd.s32 %v90, 152
    %v110 = vadd.s32 %v90, 160
    %v111 = vadd.s32 %v90, 168
    %v112 = vadd.s32 %v90, 176
    %v113 = vadd.s32 %v90, 184
    %v114 = vadd.s32 %v90, 192
    %v115 = vadd.s32 %v90, 200
    %v116 = vadd.s32 %v90, 208
    %v117 = vadd.s32 %v90, 216
    %v118 = vadd.s32 %v90, 224
    %v119 = vadd.s32 %v90, 232
    %v120 = vadd.s32 %v90, 240
    %v121 = vadd.s32 %v90, 248
    %s122 = smul.u32 0, 256
    %v123 = vstv %s122
    %v124 = vadd.s32 %v123, %v90
    %v125 = vadd.s32 %v123, %v91
    %v126 = vadd.s32 %v123, %v92
    %v127 = vadd.s32 %v123, %v93
    %v128 = vadd.s32 %v123, %v94
    %v129 = vadd.s32 %v123, %v95
    %v130 = vadd.s32 %v123, %v96
    %v131 = vadd.s32 %v123, %v97
    %v132 = vadd.s32 %v123, %v98
    %v133 = vadd.s32 %v123, %v99
    %v134 = vadd.s32 %v123, %v100
    %v135 = vadd.s32 %v123, %v101
    %v136 = vadd.s32 %v123, %v102
    %v137 = vadd.s32 %v123, %v103
    %v138 = vadd.s32 %v123, %v104
    %v139 = vadd.s32 %v123, %v105
    %v140 = vadd.s32 %v123, %v106
    %v141 = vadd.s32 %v123, %v107
    %v142 = vadd.s32 %v123, %v108
    %v143 = vadd.s32 %v123, %v109
    %v144 = vadd.s32 %v123, %v110
    %v145 = vadd.s32 %v123, %v111
    %v146 = vadd.s32 %v123, %v112
    %v147 = vadd.s32 %v123, %v113
    %v148 = vadd.s32 %v123, %v114
    %v149 = vadd.s32 %v123, %v115
    %v150 = vadd.s32 %v123, %v116
    %v151 = vadd.s32 %v123, %v117
    %v152 = vadd.s32 %v123, %v118
    %v153 = vadd.s32 %v123, %v119
    %v154 = vadd.s32 %v123, %v120
    %v155 = vadd.s32 %v123, %v121
    %vm156 = vcmp.lt.s32.totalorder %v124, 256
    %vm157 = vcmp.lt.s32.totalorder %v125, 256
    %vm158 = vcmp.lt.s32.totalorder %v126, 256
    %vm159 = vcmp.lt.s32.totalorder %v127, 256
    %vm160 = vcmp.lt.s32.totalorder %v128, 256
    %vm161 = vcmp.lt.s32.totalorder %v129, 256
    %vm162 = vcmp.lt.s32.totalorder %v130, 256
    %vm163 = vcmp.lt.s32.totalorder %v131, 256
    %vm164 = vcmp.lt.s32.totalorder %v132, 256
    %vm165 = vcmp.lt.s32.totalorder %v133, 256
    %vm166 = vcmp.lt.s32.totalorder %v134, 256
    %vm167 = vcmp.lt.s32.totalorder %v135, 256
    %vm168 = vcmp.lt.s32.totalorder %v136, 256
    %vm169 = vcmp.lt.s32.totalorder %v137, 256
    %vm170 = vcmp.lt.s32.totalorder %v138, 256
    %vm171 = vcmp.lt.s32.totalorder %v139, 256
    %vm172 = vcmp.lt.s32.totalorder %v140, 256
    %vm173 = vcmp.lt.s32.totalorder %v141, 256
    %vm174 = vcmp.lt.s32.totalorder %v142, 256
    %vm175 = vcmp.lt.s32.totalorder %v143, 256
    %vm176 = vcmp.lt.s32.totalorder %v144, 256
    %vm177 = vcmp.lt.s32.totalorder %v145, 256
    %vm178 = vcmp.lt.s32.totalorder %v146, 256
    %vm179 = vcmp.lt.s32.totalorder %v147, 256
    %vm180 = vcmp.lt.s32.totalorder %v148, 256
    %vm181 = vcmp.lt.s32.totalorder %v149, 256
    %vm182 = vcmp.lt.s32.totalorder %v150, 256
    %vm183 = vcmp.lt.s32.totalorder %v151, 256
    %vm184 = vcmp.lt.s32.totalorder %v152, 256
    %vm185 = vcmp.lt.s32.totalorder %v153, 256
    %vm186 = vcmp.lt.s32.totalorder %v154, 256
    %vm187 = vcmp.lt.s32.totalorder %v155, 256
    %188 = vset.pattern.permute.xlu0 0
    %189 = vperm.xlu0 %188, %v54
    %v190 = vpop.permute.xlu0 %189
    %191 = vset.pattern.permute.xlu0 0
    %192 = vperm.xlu0 %191, %v55
    %v193 = vpop.permute.xlu0 %192
    %194 = vset.pattern.permute.xlu0 0
    %195 = vperm.xlu0 %194, %v56
    %v196 = vpop.permute.xlu0 %195
    %197 = vset.pattern.permute.xlu0 0
    %198 = vperm.xlu0 %197, %v57
    %v199 = vpop.permute.xlu0 %198
    %200 = vset.pattern.permute.xlu0 0
    %201 = vperm.xlu0 %200, %v58
    %v202 = vpop.permute.xlu0 %201
    %203 = vset.pattern.permute.xlu0 0
    %204 = vperm.xlu0 %203, %v59
    %v205 = vpop.permute.xlu0 %204
    %206 = vset.pattern.permute.xlu0 0
    %207 = vperm.xlu0 %206, %v60
    %v208 = vpop.permute.xlu0 %207
    %209 = vset.pattern.permute.xlu0 0
    %210 = vperm.xlu0 %209, %v61
    %v211 = vpop.permute.xlu0 %210
    %212 = vset.pattern.permute.xlu0 0
    %213 = vperm.xlu0 %212, %v62
    %v214 = vpop.permute.xlu0 %213
    %215 = vset.pattern.permute.xlu0 0
    %216 = vperm.xlu0 %215, %v63
    %v217 = vpop.permute.xlu0 %216
    %218 = vset.pattern.permute.xlu0 0
    %219 = vperm.xlu0 %218, %v64
    %v220 = vpop.permute.xlu0 %219
    %221 = vset.pattern.permute.xlu0 0
    %222 = vperm.xlu0 %221, %v65
    %v223 = vpop.permute.xlu0 %222
    %224 = vset.pattern.permute.xlu0 0
    %225 = vperm.xlu0 %224, %v66
    %v226 = vpop.permute.xlu0 %225
    %227 = vset.pattern.permute.xlu0 0
    %228 = vperm.xlu0 %227, %v67
    %v229 = vpop.permute.xlu0 %228
    %230 = vset.pattern.permute.xlu0 0
    %231 = vperm.xlu0 %230, %v68
    %v232 = vpop.permute.xlu0 %231
    %233 = vset.pattern.permute.xlu0 0
    %234 = vperm.xlu0 %233, %v69
    %v235 = vpop.permute.xlu0 %234
    %236 = vset.pattern.permute.xlu0 0
    %237 = vperm.xlu0 %236, %v70
    %v238 = vpop.permute.xlu0 %237
    %239 = vset.pattern.permute.xlu0 0
    %240 = vperm.xlu0 %239, %v71
    %v241 = vpop.permute.xlu0 %240
    %242 = vset.pattern.permute.xlu0 0
    %243 = vperm.xlu0 %242, %v72
    %v244 = vpop.permute.xlu0 %243
    %245 = vset.pattern.permute.xlu0 0
    %246 = vperm.xlu0 %245, %v73
    %v247 = vpop.permute.xlu0 %246
    %248 = vset.pattern.permute.xlu0 0
    %249 = vperm.xlu0 %248, %v74
    %v250 = vpop.permute.xlu0 %249
    %251 = vset.pattern.permute.xlu0 0
    %252 = vperm.xlu0 %251, %v75
    %v253 = vpop.permute.xlu0 %252
    %254 = vset.pattern.permute.xlu0 0
    %255 = vperm.xlu0 %254, %v76
    %v256 = vpop.permute.xlu0 %255
    %257 = vset.pattern.permute.xlu0 0
    %258 = vperm.xlu0 %257, %v77
    %v259 = vpop.permute.xlu0 %258
    %260 = vset.pattern.permute.xlu0 0
    %261 = vperm.xlu0 %260, %v78
    %v262 = vpop.permute.xlu0 %261
    %263 = vset.pattern.permute.xlu0 0
    %264 = vperm.xlu0 %263, %v79
    %v265 = vpop.permute.xlu0 %264
    %266 = vset.pattern.permute.xlu0 0
    %267 = vperm.xlu0 %266, %v80
    %v268 = vpop.permute.xlu0 %267
    %269 = vset.pattern.permute.xlu0 0
    %270 = vperm.xlu0 %269, %v81
    %v271 = vpop.permute.xlu0 %270
    %272 = vset.pattern.permute.xlu0 0
    %273 = vperm.xlu0 %272, %v82
    %v274 = vpop.permute.xlu0 %273
    %275 = vset.pattern.permute.xlu0 0
    %276 = vperm.xlu0 %275, %v83
    %v277 = vpop.permute.xlu0 %276
    %278 = vset.pattern.permute.xlu0 0
    %279 = vperm.xlu0 %278, %v84
    %v280 = vpop.permute.xlu0 %279
    %281 = vset.pattern.permute.xlu0 0
    %282 = vperm.xlu0 %281, %v85
    %v283 = vpop.permute.xlu0 %282
    %vm284 = vcmp.eq.s32.totalorder %v88, %v190
    %vm285 = vcmp.eq.s32.totalorder %v88, %v193
    %vm286 = vcmp.eq.s32.totalorder %v88, %v196
    %vm287 = vcmp.eq.s32.totalorder %v88, %v199
    %vm288 = vcmp.eq.s32.totalorder %v88, %v202
    %vm289 = vcmp.eq.s32.totalorder %v88, %v205
    %vm290 = vcmp.eq.s32.totalorder %v88, %v208
    %vm291 = vcmp.eq.s32.totalorder %v88, %v211
    %vm292 = vcmp.eq.s32.totalorder %v88, %v214
    %vm293 = vcmp.eq.s32.totalorder %v88, %v217
    %vm294 = vcmp.eq.s32.totalorder %v88, %v220
    %vm295 = vcmp.eq.s32.totalorder %v88, %v223
    %vm296 = vcmp.eq.s32.totalorder %v88, %v226
    %vm297 = vcmp.eq.s32.totalorder %v88, %v229
    %vm298 = vcmp.eq.s32.totalorder %v88, %v232
    %vm299 = vcmp.eq.s32.totalorder %v88, %v235
    %vm300 = vcmp.eq.s32.totalorder %v88, %v238
    %vm301 = vcmp.eq.s32.totalorder %v88, %v241
    %vm302 = vcmp.eq.s32.totalorder %v88, %v244
    %vm303 = vcmp.eq.s32.totalorder %v88, %v247
    %vm304 = vcmp.eq.s32.totalorder %v88, %v250
    %vm305 = vcmp.eq.s32.totalorder %v88, %v253
    %vm306 = vcmp.eq.s32.totalorder %v88, %v256
    %vm307 = vcmp.eq.s32.totalorder %v88, %v259
    %vm308 = vcmp.eq.s32.totalorder %v88, %v262
    %vm309 = vcmp.eq.s32.totalorder %v88, %v265
    %vm310 = vcmp.eq.s32.totalorder %v88, %v268
    %vm311 = vcmp.eq.s32.totalorder %v88, %v271
    %vm312 = vcmp.eq.s32.totalorder %v88, %v274
    %vm313 = vcmp.eq.s32.totalorder %v88, %v277
    %vm314 = vcmp.eq.s32.totalorder %v88, %v280
    %vm315 = vcmp.eq.s32.totalorder %v88, %v283
    %v316 = vsel %vm156, 1, 0
    %v317 = vsel %vm157, 1, 0
    %v318 = vsel %vm158, 1, 0
    %v319 = vsel %vm159, 1, 0
    %v320 = vsel %vm160, 1, 0
    %v321 = vsel %vm161, 1, 0
    %v322 = vsel %vm162, 1, 0
    %v323 = vsel %vm163, 1, 0
    %v324 = vsel %vm164, 1, 0
    %v325 = vsel %vm165, 1, 0
    %v326 = vsel %vm166, 1, 0
    %v327 = vsel %vm167, 1, 0
    %v328 = vsel %vm168, 1, 0
    %v329 = vsel %vm169, 1, 0
    %v330 = vsel %vm170, 1, 0
    %v331 = vsel %vm171, 1, 0
    %v332 = vsel %vm172, 1, 0
    %v333 = vsel %vm173, 1, 0
    %v334 = vsel %vm174, 1, 0
    %v335 = vsel %vm175, 1, 0
    %v336 = vsel %vm176, 1, 0
    %v337 = vsel %vm177, 1, 0
    %v338 = vsel %vm178, 1, 0
    %v339 = vsel %vm179, 1, 0
    %v340 = vsel %vm180, 1, 0
    %v341 = vsel %vm181, 1, 0
    %v342 = vsel %vm182, 1, 0
    %v343 = vsel %vm183, 1, 0
    %v344 = vsel %vm184, 1, 0
    %v345 = vsel %vm185, 1, 0
    %v346 = vsel %vm186, 1, 0
    %v347 = vsel %vm187, 1, 0
    %vm348 = vcmp.eq.s32.totalorder %v316, 1
    %vm349 = vcmp.eq.s32.totalorder %v317, 1
    %vm350 = vcmp.eq.s32.totalorder %v318, 1
    %vm351 = vcmp.eq.s32.totalorder %v319, 1
    %vm352 = vcmp.eq.s32.totalorder %v320, 1
    %vm353 = vcmp.eq.s32.totalorder %v321, 1
    %vm354 = vcmp.eq.s32.totalorder %v322, 1
    %vm355 = vcmp.eq.s32.totalorder %v323, 1
    %vm356 = vcmp.eq.s32.totalorder %v324, 1
    %vm357 = vcmp.eq.s32.totalorder %v325, 1
    %vm358 = vcmp.eq.s32.totalorder %v326, 1
    %vm359 = vcmp.eq.s32.totalorder %v327, 1
    %vm360 = vcmp.eq.s32.totalorder %v328, 1
    %vm361 = vcmp.eq.s32.totalorder %v329, 1
    %vm362 = vcmp.eq.s32.totalorder %v330, 1
    %vm363 = vcmp.eq.s32.totalorder %v331, 1
    %vm364 = vcmp.eq.s32.totalorder %v332, 1
    %vm365 = vcmp.eq.s32.totalorder %v333, 1
    %vm366 = vcmp.eq.s32.totalorder %v334, 1
    %vm367 = vcmp.eq.s32.totalorder %v335, 1
    %vm368 = vcmp.eq.s32.totalorder %v336, 1
    %vm369 = vcmp.eq.s32.totalorder %v337, 1
    %vm370 = vcmp.eq.s32.totalorder %v338, 1
    %vm371 = vcmp.eq.s32.totalorder %v339, 1
    %vm372 = vcmp.eq.s32.totalorder %v340, 1
    %vm373 = vcmp.eq.s32.totalorder %v341, 1
    %vm374 = vcmp.eq.s32.totalorder %v342, 1
    %vm375 = vcmp.eq.s32.totalorder %v343, 1
    %vm376 = vcmp.eq.s32.totalorder %v344, 1
    %vm377 = vcmp.eq.s32.totalorder %v345, 1
    %vm378 = vcmp.eq.s32.totalorder %v346, 1
    %vm379 = vcmp.eq.s32.totalorder %v347, 1
    %vm380 = vmand %vm284, %vm348
    %vm381 = vmand %vm285, %vm349
    %vm382 = vmand %vm286, %vm350
    %vm383 = vmand %vm287, %vm351
    %vm384 = vmand %vm288, %vm352
    %vm385 = vmand %vm289, %vm353
    %vm386 = vmand %vm290, %vm354
    %vm387 = vmand %vm291, %vm355
    %vm388 = vmand %vm292, %vm356
    %vm389 = vmand %vm293, %vm357
    %vm390 = vmand %vm294, %vm358
    %vm391 = vmand %vm295, %vm359
    %vm392 = vmand %vm296, %vm360
    %vm393 = vmand %vm297, %vm361
    %vm394 = vmand %vm298, %vm362
    %vm395 = vmand %vm299, %vm363
    %vm396 = vmand %vm300, %vm364
    %vm397 = vmand %vm301, %vm365
    %vm398 = vmand %vm302, %vm366
    %vm399 = vmand %vm303, %vm367
    %vm400 = vmand %vm304, %vm368
    %vm401 = vmand %vm305, %vm369
    %vm402 = vmand %vm306, %vm370
    %vm403 = vmand %vm307, %vm371
    %vm404 = vmand %vm308, %vm372
    %vm405 = vmand %vm309, %vm373
    %vm406 = vmand %vm310, %vm374
    %vm407 = vmand %vm311, %vm375
    %vm408 = vmand %vm312, %vm376
    %vm409 = vmand %vm313, %vm377
    %vm410 = vmand %vm314, %vm378
    %vm411 = vmand %vm315, %vm379
    %v413 = vlaneseq
    %v414 = vshrl.u32 %v413, 7
    %v415 = vsub.s32 0, %v414
    %v416 = vrot.slane %v86, %v415
    %v418 = vsel %vm380, %v416, 0.0
    %v419 = vsel %vm381, %v416, 0.0
    %v420 = vsel %vm382, %v416, 0.0
    %v421 = vsel %vm383, %v416, 0.0
    %v422 = vsel %vm384, %v416, 0.0
    %v423 = vsel %vm385, %v416, 0.0
    %v424 = vsel %vm386, %v416, 0.0
    %v425 = vsel %vm387, %v416, 0.0
    %v426 = vsel %vm388, %v416, 0.0
    %v427 = vsel %vm389, %v416, 0.0
    %v428 = vsel %vm390, %v416, 0.0
    %v429 = vsel %vm391, %v416, 0.0
    %v430 = vsel %vm392, %v416, 0.0
    %v431 = vsel %vm393, %v416, 0.0
    %v432 = vsel %vm394, %v416, 0.0
    %v433 = vsel %vm395, %v416, 0.0
    %v434 = vsel %vm396, %v416, 0.0
    %v435 = vsel %vm397, %v416, 0.0
    %v436 = vsel %vm398, %v416, 0.0
    %v437 = vsel %vm399, %v416, 0.0
    %v438 = vsel %vm400, %v416, 0.0
    %v439 = vsel %vm401, %v416, 0.0
    %v440 = vsel %vm402, %v416, 0.0
    %v441 = vsel %vm403, %v416, 0.0
    %v442 = vsel %vm404, %v416, 0.0
    %v443 = vsel %vm405, %v416, 0.0
    %v444 = vsel %vm406, %v416, 0.0
    %v445 = vsel %vm407, %v416, 0.0
    %v446 = vsel %vm408, %v416, 0.0
    %v447 = vsel %vm409, %v416, 0.0
    %v448 = vsel %vm410, %v416, 0.0
    %v449 = vsel %vm411, %v416, 0.0
    %v450 = vmul.f32 %v22, %v416
    %v451 = vmul.f32 %v23, %v416
    %v452 = vmul.f32 %v24, %v416
    %v453 = vmul.f32 %v25, %v416
    %v454 = vmul.f32 %v26, %v416
    %v455 = vmul.f32 %v27, %v416
    %v456 = vmul.f32 %v28, %v416
    %v457 = vmul.f32 %v29, %v416
    %v458 = vmul.f32 %v30, %v416
    %v459 = vmul.f32 %v31, %v416
    %v460 = vmul.f32 %v32, %v416
    %v461 = vmul.f32 %v33, %v416
    %v462 = vmul.f32 %v34, %v416
    %v463 = vmul.f32 %v35, %v416
    %v464 = vmul.f32 %v36, %v416
    %v465 = vmul.f32 %v37, %v416
    %v466 = vmul.f32 %v38, %v416
    %v467 = vmul.f32 %v39, %v416
    %v468 = vmul.f32 %v40, %v416
    %v469 = vmul.f32 %v41, %v416
    %v470 = vmul.f32 %v42, %v416
    %v471 = vmul.f32 %v43, %v416
    %v472 = vmul.f32 %v44, %v416
    %v473 = vmul.f32 %v45, %v416
    %v474 = vmul.f32 %v46, %v416
    %v475 = vmul.f32 %v47, %v416
    %v476 = vmul.f32 %v48, %v416
    %v477 = vmul.f32 %v49, %v416
    %v478 = vmul.f32 %v50, %v416
    %v479 = vmul.f32 %v51, %v416
    %v480 = vmul.f32 %v52, %v416
    %v481 = vmul.f32 %v53, %v416
    %v482 = vsel %vm380, %v450, 0.0
    %v483 = vsel %vm381, %v451, 0.0
    %v484 = vsel %vm382, %v452, 0.0
    %v485 = vsel %vm383, %v453, 0.0
    %v486 = vsel %vm384, %v454, 0.0
    %v487 = vsel %vm385, %v455, 0.0
    %v488 = vsel %vm386, %v456, 0.0
    %v489 = vsel %vm387, %v457, 0.0
    %v490 = vsel %vm388, %v458, 0.0
    %v491 = vsel %vm389, %v459, 0.0
    %v492 = vsel %vm390, %v460, 0.0
    %v493 = vsel %vm391, %v461, 0.0
    %v494 = vsel %vm392, %v462, 0.0
    %v495 = vsel %vm393, %v463, 0.0
    %v496 = vsel %vm394, %v464, 0.0
    %v497 = vsel %vm395, %v465, 0.0
    %v498 = vsel %vm396, %v466, 0.0
    %v499 = vsel %vm397, %v467, 0.0
    %v500 = vsel %vm398, %v468, 0.0
    %v501 = vsel %vm399, %v469, 0.0
    %v502 = vsel %vm400, %v470, 0.0
    %v503 = vsel %vm401, %v471, 0.0
    %v504 = vsel %vm402, %v472, 0.0
    %v505 = vsel %vm403, %v473, 0.0
    %v506 = vsel %vm404, %v474, 0.0
    %v507 = vsel %vm405, %v475, 0.0
    %v508 = vsel %vm406, %v476, 0.0
    %v509 = vsel %vm407, %v477, 0.0
    %v510 = vsel %vm408, %v478, 0.0
    %v511 = vsel %vm409, %v479, 0.0
    %v512 = vsel %vm410, %v480, 0.0
    %v513 = vsel %vm411, %v481, 0.0
    %v514 = vld [vmem:[#allocation2] sm:$0xff]
    %vm515 = vcmask 105472
    %v516 = vsel %vm515, %v482, 0.0
    %v517 = vsel %vm515, %v483, 0.0
    %v518 = vadd.f32 %v516, %v517
    %v519 = vsel %vm515, %v484, 0.0
    %v520 = vadd.f32 %v518, %v519
    %v521 = vsel %vm515, %v485, 0.0
    %v522 = vadd.f32 %v520, %v521
    %v523 = vsel %vm515, %v486, 0.0
    %v524 = vadd.f32 %v522, %v523
    %v525 = vsel %vm515, %v487, 0.0
    %v526 = vadd.f32 %v524, %v525
    %v527 = vsel %vm515, %v488, 0.0
    %v528 = vadd.f32 %v526, %v527
    %v529 = vsel %vm515, %v489, 0.0
    %v530 = vadd.f32 %v528, %v529
    %v531 = vsel %vm515, %v490, 0.0
    %v532 = vadd.f32 %v530, %v531
    %v533 = vsel %vm515, %v491, 0.0
    %v534 = vadd.f32 %v532, %v533
    %v535 = vsel %vm515, %v492, 0.0
    %v536 = vadd.f32 %v534, %v535
    %v537 = vsel %vm515, %v493, 0.0
    %v538 = vadd.f32 %v536, %v537
    %v539 = vsel %vm515, %v494, 0.0
    %v540 = vadd.f32 %v538, %v539
    %v541 = vsel %vm515, %v495, 0.0
    %v542 = vadd.f32 %v540, %v541
    %v543 = vsel %vm515, %v496, 0.0
    %v544 = vadd.f32 %v542, %v543
    %v545 = vsel %vm515, %v497, 0.0
    %v546 = vadd.f32 %v544, %v545
    %v547 = vsel %vm515, %v498, 0.0
    %v548 = vadd.f32 %v546, %v547
    %v549 = vsel %vm515, %v499, 0.0
    %v550 = vadd.f32 %v548, %v549
    %v551 = vsel %vm515, %v500, 0.0
    %v552 = vadd.f32 %v550, %v551
    %v553 = vsel %vm515, %v501, 0.0
    %v554 = vadd.f32 %v552, %v553
    %v555 = vsel %vm515, %v502, 0.0
    %v556 = vadd.f32 %v554, %v555
    %v557 = vsel %vm515, %v503, 0.0
    %v558 = vadd.f32 %v556, %v557
    %v559 = vsel %vm515, %v504, 0.0
    %v560 = vadd.f32 %v558, %v559
    %v561 = vsel %vm515, %v505, 0.0
    %v562 = vadd.f32 %v560, %v561
    %v563 = vsel %vm515, %v506, 0.0
    %v564 = vadd.f32 %v562, %v563
    %v565 = vsel %vm515, %v507, 0.0
    %v566 = vadd.f32 %v564, %v565
    %v567 = vsel %vm515, %v508, 0.0
    %v568 = vadd.f32 %v566, %v567
    %v569 = vsel %vm515, %v509, 0.0
    %v570 = vadd.f32 %v568, %v569
    %v571 = vsel %vm515, %v510, 0.0
    %v572 = vadd.f32 %v570, %v571
    %v573 = vsel %vm515, %v511, 0.0
    %v574 = vadd.f32 %v572, %v573
    %v575 = vsel %vm515, %v512, 0.0
    %v576 = vadd.f32 %v574, %v575
    %v577 = vsel %vm515, %v513, 0.0
    %v578 = vadd.f32 %v576, %v577
    %v579 = vadd.f32 %v514, %v578
    %580 = vst.msk [vmem:[#allocation2] sm:$0xff] %vm515, %v579
    %v581 = vld [vmem:[#allocation3] sm:$0xff]
    %v582 = vsel %vm515, %v418, 0.0
    %v583 = vsel %vm515, %v419, 0.0
    %v584 = vadd.f32 %v582, %v583
    %v585 = vsel %vm515, %v420, 0.0
    %v586 = vadd.f32 %v584, %v585
    %v587 = vsel %vm515, %v421, 0.0
    %v588 = vadd.f32 %v586, %v587
    %v589 = vsel %vm515, %v422, 0.0
    %v590 = vadd.f32 %v588, %v589
    %v591 = vsel %vm515, %v423, 0.0
    %v592 = vadd.f32 %v590, %v591
    %v593 = vsel %vm515, %v424, 0.0
    %v594 = vadd.f32 %v592, %v593
    %v595 = vsel %vm515, %v425, 0.0
    %v596 = vadd.f32 %v594, %v595
    %v597 = vsel %vm515, %v426, 0.0
    %v598 = vadd.f32 %v596, %v597
    %v599 = vsel %vm515, %v427, 0.0
    %v600 = vadd.f32 %v598, %v599
    %v601 = vsel %vm515, %v428, 0.0
    %v602 = vadd.f32 %v600, %v601
    %v603 = vsel %vm515, %v429, 0.0
    %v604 = vadd.f32 %v602, %v603
    %v605 = vsel %vm515, %v430, 0.0
    %v606 = vadd.f32 %v604, %v605
    %v607 = vsel %vm515, %v431, 0.0
    %v608 = vadd.f32 %v606, %v607
    %v609 = vsel %vm515, %v432, 0.0
    %v610 = vadd.f32 %v608, %v609
    %v611 = vsel %vm515, %v433, 0.0
    %v612 = vadd.f32 %v610, %v611
    %v613 = vsel %vm515, %v434, 0.0
    %v614 = vadd.f32 %v612, %v613
    %v615 = vsel %vm515, %v435, 0.0
    %v616 = vadd.f32 %v614, %v615
    %v617 = vsel %vm515, %v436, 0.0
    %v618 = vadd.f32 %v616, %v617
    %v619 = vsel %vm515, %v437, 0.0
    %v620 = vadd.f32 %v618, %v619
    %v621 = vsel %vm515, %v438, 0.0
    %v622 = vadd.f32 %v620, %v621
    %v623 = vsel %vm515, %v439, 0.0
    %v624 = vadd.f32 %v622, %v623
    %v625 = vsel %vm515, %v440, 0.0
    %v626 = vadd.f32 %v624, %v625
    %v627 = vsel %vm515, %v441, 0.0
    %v628 = vadd.f32 %v626, %v627
    %v629 = vsel %vm515, %v442, 0.0
    %v630 = vadd.f32 %v628, %v629
    %v631 = vsel %vm515, %v443, 0.0
    %v632 = vadd.f32 %v630, %v631
    %v633 = vsel %vm515, %v444, 0.0
    %v634 = vadd.f32 %v632, %v633
    %v635 = vsel %vm515, %v445, 0.0
    %v636 = vadd.f32 %v634, %v635
    %v637 = vsel %vm515, %v446, 0.0
    %v638 = vadd.f32 %v636, %v637
    %v639 = vsel %vm515, %v447, 0.0
    %v640 = vadd.f32 %v638, %v639
    %v641 = vsel %vm515, %v448, 0.0
    %v642 = vadd.f32 %v640, %v641
    %v643 = vsel %vm515, %v449, 0.0
    %v644 = vadd.f32 %v642, %v643
    %v645 = vadd.f32 %v581, %v644
    %646 = vst.msk [vmem:[#allocation3] sm:$0xff] %vm515, %v645
    // Predicated region
    $region18: #{tpu_custom_call.1} parent=1 // pred_check
      %p647 = pneg %p15
    $region19: #{tpu_custom_call.1} parent=1 // pred_check_branch
      %649 = sbr.rel (%p647) target = $region21
    $region20: #{tpu_custom_call.1} parent=1 // pred_region
      %v650 = vld [vmem:[#allocation2] sm:$0xff]
      %v651 = vsel %vm515, %v650, 0.0
      %652 = vadd.xlane.f32.xlu0 %v651
      %v653 = vpop.xlane.xlu0 %652
      %v654 = vrot.slane %v653, 4
      %v655 = vadd.f32 %v653, %v654
      %v656 = vrot.slane %v655, 2
      %v657 = vadd.f32 %v655, %v656
      %v658 = vrot.slane %v657, 1
      %v659 = vadd.f32 %v657, %v658
      %s660 = vtos %v659
      %v661 = vstv %s660
      %v662 = vld [vmem:[#allocation3] sm:$0xff]
      %v663 = vsel %vm515, %v662, 0.0
      %664 = vadd.xlane.f32.xlu0 %v663
      %v665 = vpop.xlane.xlu0 %664
      %v666 = vrot.slane %v665, 4
      %v667 = vadd.f32 %v665, %v666
      %v668 = vrot.slane %v667, 2
      %v669 = vadd.f32 %v667, %v668
      %v670 = vrot.slane %v669, 1
      %v671 = vadd.f32 %v669, %v670
      %s672 = vtos %v671
      %v673 = vstv %s672
      %v674 = vrcp.pop %v673
      %v675 = vmul.f32 %v661, %v674
      %v676 = vsub.f32 0.0, %v675
      %vm677 = vcmask 0
      %678 = vst.msk [vmem:[#allocation4] sm:$0x1] %vm677, %v676
    $region21: #{tpu_custom_call.1} parent=1 // pred_fallthru
      _
    // Predicated region
    $region22: #{tpu_custom_call.1} parent=1 // pred_check
      _
    $region23: #{tpu_custom_call.1} parent=1 // pred_check_branch
      %680 = sbr.rel (0) target = $region25
    $region24: #{tpu_custom_call.1} parent=1 // pred_region
      %s682 = ssub.s32 16, 16
      %683 = vsyncadd [#allocation5], %s682
      %s685 = sshll.u32 [#allocation4], 4
      %s686 = int_to_ptr.vmem [resolvable:$true] %s685
      %688 = dma.vmem_to_hbm [thread:$0]  %s686, 16, %s3, [#allocation5]
    $region25: #{tpu_custom_call.1} parent=1 // pred_fallthru
      _
    // Predicated region
    $region26: #{tpu_custom_call.1} parent=1 // pred_check
      _
    $region27: #{tpu_custom_call.1} parent=1 // pred_check_branch
      %690 = sbr.rel (0) target = $region29
    $region28: #{tpu_custom_call.1} parent=1 // pred_region
      %691 = dma.done [#allocation5], 16
    $region29: #{tpu_custom_call.1} parent=1 // pred_fallthru
      _
    %692 = vsyncpa [#allocation5], 1

</llo_original>
